<compile_context>
chip_gen: v7x
topology: tpu7x:2x2x1
jax: 0.10.0
libtpu: 0.0.40
codegen_flags: <defaults>
</compile_context>

<pallas_src>
import jax
import jax.numpy as jnp
from jax import lax
from jax.experimental import pallas as pl
from jax.experimental.pallas import tpu as pltpu


_MIB = 1024 * 1024
_VPU_PATH_MAX_DIM = 16  # below this, skip the MXU (tiny matmuls are latency-bound)


def _vpu_kernel(x1_ref, x2_ref, o_ref):
    """Tiny-shape path: both contractions as VPU broadcast-multiply + reductions."""
    x1 = x1_ref[...].astype(jnp.float32)          # (Bt, M, N)
    x2 = x2_ref[...].astype(jnp.float32)          # (Bt, M, N)
    # v6[b, i, j] = sum_m x1[b, m, i] * x2[b, m, j]      (= x1^T @ x2)
    v6 = jnp.sum(x1[:, :, :, None] * x2[:, :, None, :], axis=1)      # (Bt, N, N)
    # out[b, i, k] = sum_j v6[b, i, j] * x2[b, k, j]     (= v6 @ x2^T)
    out = jnp.sum(v6[:, :, None, :] * x2[:, None, :, :], axis=3)     # (Bt, N, M)
    o_ref[...] = out.astype(o_ref.dtype)


def _make_mxu_kernel(fast_f32_matmul):
    def kernel(x1_ref, x2_ref, o_ref):
        x1 = x1_ref[...]                          # (Bt, M, N)
        x2 = x2_ref[...]                          # (Bt, M, N)
        if fast_f32_matmul and x1.dtype == jnp.float32:
            # Reduced-precision MXU fast path (bf16 operands, f32 accumulation).
            x1 = x1.astype(jnp.bfloat16)
            x2 = x2.astype(jnp.bfloat16)

        # v6 = x1^T @ x2 : contract the M (sublane) axes, batch over axis 0.
        # Transpose folded into dimension_numbers (MXU trans_a feed).
        v6 = lax.dot_general(
            x1, x2,
            dimension_numbers=(((1,), (1,)), ((0,), (0,))),
            preferred_element_type=jnp.float32)                       # (Bt, N, N)

        if x2.dtype == jnp.bfloat16:
            # Feed the second matmul in bf16 (fast MXU path, f32 accumulation).
            # NOTE: double rounding vs an all-f32 reference; use loose tolerance.
            v6 = v6.astype(jnp.bfloat16)

        # out = v6 @ x2^T : contract the N (lane) axes, batch over axis 0
        # (MXU trans_b feed; no materialized transpose).
        out = lax.dot_general(
            v6, x2,
            dimension_numbers=(((2,), (2,)), ((0,), (0,))),
            preferred_element_type=jnp.float32)                       # (Bt, N, M)

        o_ref[...] = out.astype(o_ref.dtype)
    return kernel


def _vmem_budget():
    """Return (vmem_limit_bytes, per-step block budget) for this TPU generation."""
    try:
        info = pltpu.get_tpu_info()
        phys = int(getattr(info, "vmem_capacity_bytes", 0)) or 64 * _MIB
    except Exception:
        phys = 64 * _MIB  # conservative fallback: smallest generation (v7x)
    # ~96 MiB scoped limit on 128 MiB chips (v5e/v6e), ~48 MiB on v7x (64 MiB).
    vmem_limit = min((phys * 3) // 4, 96 * _MIB)
    # Per-step block budget (double buffering already counted in per_batch_bytes):
    # ~38 MiB on v5e/v6e, ~19 MiB on v7x; leaves headroom for compiler scratch.
    block_budget = (vmem_limit * 2) // 5
    return vmem_limit, block_budget


def model_forward(x1, x2, *, fast_f32_matmul=False):
    """Pallas implementation of Model.forward(x1, x2): (x1^T @ x2) @ x2^T per batch."""
    assert x1.shape == x2.shape, "module applies both matmuls to same-shaped inputs"
    B, M, N = x1.shape
    itemsize = jnp.dtype(x1.dtype).itemsize

    use_vpu = (M <= _VPU_PATH_MAX_DIM) and (N <= _VPU_PATH_MAX_DIM)
    kernel = _vpu_kernel if use_vpu else _make_mxu_kernel(fast_f32_matmul)

    vmem_limit, block_budget = _vmem_budget()

    # Per-batch-element VMEM footprint of one grid step.
    # Every BlockSpec-managed tile (2 inputs + 1 output) is double-buffered (2x).
    io_bytes = 2 * (2 * M * N * itemsize + N * M * itemsize)
    if use_vpu:
        # f32 upcasts + broadcast products + v6 + f32 out (upper bound).
        interm_bytes = 4 * (2 * M * N + M * N * N + N * N + N * M * N + N * M)
    else:
        # f32 v6 intermediate + f32 pre-cast output.
        interm_bytes = 4 * (N * N + N * M)
    per_batch_bytes = io_bytes + interm_bytes

    # Largest batch block within budget; keep >= 2 grid steps (when B >= 2) so
    # both v7x TensorCores get work (costs nothing on single-TC v5e/v6e).
    bt = max(1, min(B, block_budget // per_batch_bytes))
    if B >= 2:
        bt = min(bt, max(1, B // 2))
    grid = (pl.cdiv(B, bt),)  # bt need not divide B: tail block is masked.

    in_spec = pl.BlockSpec((bt, M, N), lambda b: (b, 0, 0))
    out_spec = pl.BlockSpec((bt, N, M), lambda b: (b, 0, 0))

    return pl.pallas_call(
        kernel,
        out_shape=jax.ShapeDtypeStruct((B, N, M), x1.dtype),
        grid_spec=pltpu.PrefetchScalarGridSpec(
            num_scalar_prefetch=0,
            grid=grid,
            in_specs=[in_spec, in_spec],
            out_specs=out_spec,
        ),
        compiler_params=pltpu.CompilerParams(
            dimension_semantics=("parallel",),
            vmem_limit_bytes=vmem_limit,
        ),
    )(x1, x2)


def _reference(x1, x2):
    v1 = jnp.swapaxes(x1, 1, 2)
    v3 = jnp.swapaxes(x2, 1, 2)
    v6 = jnp.matmul(v1, x2, precision=lax.Precision.HIGHEST)
    return jnp.matmul(v6, v3, precision=lax.Precision.HIGHEST)


def _check(out, ref, rel_tol):
    assert out.shape == ref.shape
    err = float(jnp.max(jnp.abs(out - ref)))
    scale = float(jnp.max(jnp.abs(ref)))
    assert err <= rel_tol * scale + 1e-5, f"max abs err {err} vs scale {scale}"


if __name__ == "__main__":
    key = jax.random.PRNGKey(0)
    k1, k2, k3, k4 = jax.random.split(key, 4)

    # 1) Tiny square inputs matching the module's (B, n, n) usage -> VPU path,
    #    two "parallel" grid steps.
    B, N = 2, 8
    x1 = jax.random.normal(k1, (B, N, N), dtype=jnp.float32)
    x2 = jax.random.normal(k2, (B, N, N), dtype=jnp.float32)
    out = jax.block_until_ready(model_forward(x1, x2))
    _check(out, _reference(x1, x2), rel_tol=1e-3)

    # 2) Mid-size inputs -> MXU path; B=5 with bt=2 exercises the masked
    #    partial tail block (grid = cdiv(5, 2) = 3).
    B2, N2 = 5, 32
    y1 = jax.random.normal(k3, (B2, N2, N2), dtype=jnp.float32)
    y2 = jax.random.normal(k4, (B2, N2, N2), dtype=jnp.float32)
    out2 = jax.block_until_ready(model_forward(y1, y2))
    _check(out2, _reference(y1, y2), rel_tol=2e-2)

    print("KERNEL_OK")
</pallas_src>

<mosaic_0001>
module attributes {stable_mosaic.version = 11 : i64} {
  func.func @_vpu_kernel(%arg0: i32, %arg1: memref<1x8x8xf32, #tpu.memory_space<vmem>>, %arg2: memref<1x8x8xf32, #tpu.memory_space<vmem>>, %arg3: memref<1x8x8xf32, #tpu.memory_space<vmem>>) attributes {dimension_semantics = [#tpu.dimension_semantics<parallel>], iteration_bounds = array<i64: 2>, scalar_prefetch = 0 : i64, scratch_operands = 0 : i64, tpu.core_type = #tpu.core_type<tc>, window_params = [{transform_indices = @transform_0, window_bounds = array<i64: 1, 8, 8>}, {transform_indices = @transform_1, window_bounds = array<i64: 1, 8, 8>}, {transform_indices = @transform_2, window_bounds = array<i64: 1, 8, 8>}]} {
    %c0 = arith.constant 0 : index
    %c0_0 = arith.constant 0 : index
    %c0_1 = arith.constant 0 : index
    %0 = vector.load %arg1[%c0, %c0_0, %c0_1] : memref<1x8x8xf32, #tpu.memory_space<vmem>>, vector<1x8x8xf32>
    %c0_2 = arith.constant 0 : index
    %c0_3 = arith.constant 0 : index
    %c0_4 = arith.constant 0 : index
    %1 = vector.load %arg2[%c0_2, %c0_3, %c0_4] : memref<1x8x8xf32, #tpu.memory_space<vmem>>, vector<1x8x8xf32>
    %2 = vector.shape_cast %0 : vector<1x8x8xf32> to vector<1x8x8x1xf32>
    %3 = vector.shape_cast %1 : vector<1x8x8xf32> to vector<1x8x1x8xf32>
    %4 = vector.broadcast %2 : vector<1x8x8x1xf32> to vector<1x8x8x8xf32>
    %5 = vector.broadcast %3 : vector<1x8x1x8xf32> to vector<1x8x8x8xf32>
    %6 = arith.mulf %4, %5 : vector<1x8x8x8xf32>
    %cst = arith.constant dense<0.000000e+00> : vector<1x8x8xf32>
    %7 = vector.multi_reduction <add>, %6, %cst [1] : vector<1x8x8x8xf32> to vector<1x8x8xf32>
    %8 = vector.shape_cast %7 : vector<1x8x8xf32> to vector<1x8x1x8xf32>
    %9 = vector.shape_cast %1 : vector<1x8x8xf32> to vector<1x1x8x8xf32>
    %10 = vector.broadcast %8 : vector<1x8x1x8xf32> to vector<1x8x8x8xf32>
    %11 = vector.broadcast %9 : vector<1x1x8x8xf32> to vector<1x8x8x8xf32>
    %12 = arith.mulf %10, %11 : vector<1x8x8x8xf32>
    %cst_5 = arith.constant dense<0.000000e+00> : vector<1x8x8xf32>
    %13 = vector.multi_reduction <add>, %12, %cst_5 [3] : vector<1x8x8x8xf32> to vector<1x8x8xf32>
    %c0_6 = arith.constant 0 : index
    %c0_7 = arith.constant 0 : index
    %c0_8 = arith.constant 0 : index
    %14 = vector.load %arg3[%c0_6, %c0_7, %c0_8] : memref<1x8x8xf32, #tpu.memory_space<vmem>>, vector<1x8x8xf32>
    tpu.vector_store %arg3[%c0_6, %c0_7, %c0_8], %13 {strides = array<i32>} : memref<1x8x8xf32, #tpu.memory_space<vmem>>, vector<1x8x8xf32>,
    return
  }
  func.func @transform_0(%arg0: i32) -> (i32, i32, i32) {
    %c0_i32 = arith.constant 0 : i32
    %c0_i32_0 = arith.constant 0 : i32
    %c0_i32_1 = arith.constant 0 : i32
    return %arg0, %c0_i32, %c0_i32_0 : i32, i32, i32
  }
  func.func @transform_1(%arg0: i32) -> (i32, i32, i32) {
    %c0_i32 = arith.constant 0 : i32
    %c0_i32_0 = arith.constant 0 : i32
    %c0_i32_1 = arith.constant 0 : i32
    return %arg0, %c0_i32, %c0_i32_0 : i32, i32, i32
  }
  func.func @transform_2(%arg0: i32) -> (i32, i32, i32) {
    %c0_i32 = arith.constant 0 : i32
    %c0_i32_0 = arith.constant 0 : i32
    %c0_i32_1 = arith.constant 0 : i32
    return %arg0, %c0_i32, %c0_i32_0 : i32, i32, i32
  }
}

</mosaic_0001>

<llo_original>
// kernel: tpu_custom_call.1
$region0: #{tpu_custom_call.1}
  #allocation0 [shape = 'u32[]', space=smem, size = 0x4, offset = 0x4, fixed_abs, tag = 'smem constant byte address 0x4 - core index']
  #allocation1 [shape = 'u32[144,128]{1,0:T(1,128)}', space=vmem, size = 0x12000, scoped, tag = 'internal scratch']
  %s0 = inlined_call_operand.hbm [shape: f32[2,8,8], index: 0, kind: input, shape index: {}]
  %s1 = inlined_call_operand.hbm [shape: f32[2,8,8], index: 1, kind: input, shape index: {}]
  %s2 = inlined_call_operand.hbm [shape: f32[2,8,8], index: 2, kind: output, shape index: {}]
  %s3 = sld [smem:[#allocation0]]
  $region49: #{tpu_custom_call.1} parent=0
    _
  %s5 = ssub.s32 1, %s3
  %s6 = scalar_select 0, %s5, %s3
  $region1: #{tpu_custom_call.1} parent=0
    #allocation2 [shape = 'u8[8192]{0}', space=vmem, size = 0x2000, scoped, tag = 'input window, operand 0']
    #allocation3 [shape = 's32[2]{0}', space=sflag, size = 0x8, scoped, tag = 'scoped memory for tpu_custom_call.1']
    #allocation4 [shape = 's32[2]{0}', space=sflag, size = 0x8, scoped, tag = 'scoped memory for tpu_custom_call.1']
    #allocation5 [shape = 'u8[8192]{0}', space=vmem, size = 0x2000, scoped, tag = 'input window, operand 1']
    #allocation6 [shape = 's32[2]{0}', space=sflag, size = 0x8, scoped, tag = 'scoped memory for tpu_custom_call.1']
    #allocation7 [shape = 'u8[8192]{0}', space=vmem, size = 0x2000, scoped, tag = 'output window, operand 0']
    %7 = vsyncpa [#allocation3], 0
    %s8 = scalar_lea.sflag [#allocation3], 1
    %9 = vsyncpa %s8, 0
    %10 = vsyncpa [#allocation6], 0
    %s11 = scalar_lea.sflag [#allocation6], 1
    %12 = vsyncpa %s11, 0
    %13 = vsyncpa [#allocation4], 0
    %s14 = scalar_lea.sflag [#allocation4], 1
    %15 = vsyncpa %s14, 0
    loop: start=0, step=1, limit=4
    $region2: #{tpu_custom_call.1} parent=1 // loop_pre_header
      _
    $region3: #{tpu_custom_call.1} parent=1 // loop_header
      %s17 = sphi 0, %s21
      %p18 = scmp.ge.s32.totalorder %s17, 4
      %s27 = sphi 0, %s29
      %s30 = sphi 0, %s27
      %s31 = sphi 0, %s30
      %s47 = sphi 0, %s31
      %s53 = sphi 0, %s55
      %s56 = sphi 0, %s53
      %s57 = sphi 0, %s56
      %s73 = sphi 0, %s57
      %s79 = sphi 0, %s81
      %s82 = sphi 0, %s79
      %s83 = sphi 0, %s82
      %s99 = sphi 0, %s83
    $region4: #{tpu_custom_call.1} parent=1 // loop_header_branch
      %20 = sbr.rel (%p18) target = $region8
    $region5: #{tpu_custom_call.1} parent=1 // loop_body
      %s22 = ssub.s32 %s17, 1
      %s23 = ssub.s32 %s17, 2
      %s24 = sadd.s32 %s17, 1
      %s25 = ssub.s32 %s17, %s24
      %p26 = scmp.eq.s32.totalorder %s25, 0
      %s28 = sadd.s32 %s27, 1
      %s29 = scalar_select %p26, %s27, %s28
      %p32 = pneg %p26
      %p33 = scmp.eq.s32.totalorder %s17, 1
      %p34 = por %p32, %p33
      %p35 = scmp.ne.s32.totalorder %s27, %s30
      %p36 = scmp.eq.s32.totalorder %s17, 0
      %p37 = por %p35, %p36
      %p38 = scmp.ne.s32.totalorder %s27, %s30
      %p39 = scmp.eq.s32.totalorder %s22, 1
      %p40 = por %p38, %p39
      %p41 = scmp.ne.s32.totalorder %s30, %s31
      %p42 = scmp.eq.s32.totalorder %s22, 0
      %p43 = por %p41, %p42
      %p44 = scmp.ne.s32.totalorder %s30, %s31
      %p45 = scmp.eq.s32.totalorder %s23, 1
      %p46 = por %p44, %p45
      %p48 = scmp.ne.s32.totalorder %s31, %s47
      %p49 = scmp.eq.s32.totalorder %s23, 0
      %p50 = por %p48, %p49
      %s51 = ssub.s32 %s17, %s24
      %p52 = scmp.eq.s32.totalorder %s51, 0
      %s54 = sadd.s32 %s53, 1
      %s55 = scalar_select %p52, %s53, %s54
      %p58 = pneg %p52
      %p59 = scmp.eq.s32.totalorder %s17, 1
      %p60 = por %p58, %p59
      %p61 = scmp.ne.s32.totalorder %s53, %s56
      %p62 = scmp.eq.s32.totalorder %s17, 0
      %p63 = por %p61, %p62
      %p64 = scmp.ne.s32.totalorder %s53, %s56
      %p65 = scmp.eq.s32.totalorder %s22, 1
      %p66 = por %p64, %p65
      %p67 = scmp.ne.s32.totalorder %s56, %s57
      %p68 = scmp.eq.s32.totalorder %s22, 0
      %p69 = por %p67, %p68
      %p70 = scmp.ne.s32.totalorder %s56, %s57
      %p71 = scmp.eq.s32.totalorder %s23, 1
      %p72 = por %p70, %p71
      %p74 = scmp.ne.s32.totalorder %s57, %s73
      %p75 = scmp.eq.s32.totalorder %s23, 0
      %p76 = por %p74, %p75
      %s77 = ssub.s32 %s17, %s24
      %p78 = scmp.eq.s32.totalorder %s77, 0
      %s80 = sadd.s32 %s79, 1
      %s81 = scalar_select %p78, %s79, %s80
      %p84 = pneg %p78
      %p85 = scmp.eq.s32.totalorder %s17, 1
      %p86 = por %p84, %p85
      %p87 = scmp.ne.s32.totalorder %s79, %s82
      %p88 = scmp.eq.s32.totalorder %s17, 0
      %p89 = por %p87, %p88
      %p90 = scmp.ne.s32.totalorder %s79, %s82
      %p91 = scmp.eq.s32.totalorder %s22, 1
      %p92 = por %p90, %p91
      %p93 = scmp.ne.s32.totalorder %s82, %s83
      %p94 = scmp.eq.s32.totalorder %s22, 0
      %p95 = por %p93, %p94
      %p96 = scmp.ne.s32.totalorder %s82, %s83
      %p97 = scmp.eq.s32.totalorder %s23, 1
      %p98 = por %p96, %p97
      %p100 = scmp.ne.s32.totalorder %s83, %s99
      %p101 = scmp.eq.s32.totalorder %s23, 0
      %p102 = por %p100, %p101
      %p103 = scmp.le.s32.totalorder 1, %s17
      %p104 = scmp.lt.s32.totalorder %s17, 3
      %p105 = pnand %p103, %p104
      %p106 = pneg %p105
      // Predicated region
      $region9: #{tpu_custom_call.1} parent=5 // pred_check
        _
      $region10: #{tpu_custom_call.1} parent=5 // pred_check_branch
        %108 = sbr.rel (%p105) target = $region12
      $region11: #{tpu_custom_call.1} parent=5 // pred_region
        %s109 = ssub.s32 %s17, 1
      $region12: #{tpu_custom_call.1} parent=5 // pred_fallthru
        _
      %p110 = scmp.lt.s32.totalorder %s17, 2
      // Predicated region
      $region13: #{tpu_custom_call.1} parent=5 // pred_check
        %p111 = pneg %p110
      $region14: #{tpu_custom_call.1} parent=5 // pred_check_branch
        %113 = sbr.rel (%p111) target = $region16
      $region15: #{tpu_custom_call.1} parent=5 // pred_region
        // Predicated region
        $region17: #{tpu_custom_call.1} parent=15 // pred_check
          %p114 = pneg %p37
        $region18: #{tpu_custom_call.1} parent=15 // pred_check_branch
          %116 = sbr.rel (%p114) target = $region20
        $region19: #{tpu_custom_call.1} parent=15 // pred_region
          %s117 = sand.u32 %s27, 1
          %s118 = scalar_lea.sflag [#allocation3], %s117
          %s119 = sand.u32 %s27, 1
          %s120 = smul.addr %s119, 8
          %s121 = scalar_lea.vmem [#allocation2], %s120
          %s123 = ssub.s32 128, 128
          %124 = vsyncadd %s118, %s123
          %s125 = smul.addr %s17, 128
          %s126 = scalar_lea.hbm %s0, %s125
          %s128 = sshll.u32 %s121, 4
          %s129 = int_to_ptr.vmem [resolvable:$true] %s128
          %131 = dma.hbm_to_vmem [thread:$0]  %s126, 128, %s129, %s118
        $region20: #{tpu_custom_call.1} parent=15 // pred_fallthru
          _
        // Predicated region
        $region21: #{tpu_custom_call.1} parent=15 // pred_check
          %p132 = pneg %p63
        $region22: #{tpu_custom_call.1} parent=15 // pred_check_branch
          %134 = sbr.rel (%p132) target = $region24
        $region23: #{tpu_custom_call.1} parent=15 // pred_region
          %s135 = sand.u32 %s53, 1
          %s136 = scalar_lea.sflag [#allocation6], %s135
          %s137 = sand.u32 %s53, 1
          %s138 = smul.addr %s137, 8
          %s139 = scalar_lea.vmem [#allocation5], %s138
          %s141 = ssub.s32 128, 128
          %142 = vsyncadd %s136, %s141
          %s143 = smul.addr %s17, 128
          %s144 = scalar_lea.hbm %s1, %s143
          %s146 = sshll.u32 %s139, 4
          %s147 = int_to_ptr.vmem [resolvable:$true] %s146
          %149 = dma.hbm_to_vmem [thread:$0]  %s144, 128, %s147, %s136
        $region24: #{tpu_custom_call.1} parent=15 // pred_fallthru
          _
      $region16: #{tpu_custom_call.1} parent=5 // pred_fallthru
        _
      %p150 = scmp.le.s32.totalorder 1, %s17
      %p151 = scmp.lt.s32.totalorder %s17, 3
      %p152 = pnand %p150, %p151
      %p153 = pneg %p152
      // Predicated region
      $region25: #{tpu_custom_call.1} parent=5 // pred_check
        _
      $region26: #{tpu_custom_call.1} parent=5 // pred_check_branch
        %155 = sbr.rel (%p152) target = $region28
      $region27: #{tpu_custom_call.1} parent=5 // pred_region
        %s156 = ssub.s32 %s17, 1
        %s157 = sand.u32 %s30, 1
        %s158 = scalar_lea.sflag [#allocation3], %s157
        %s159 = sand.u32 %s30, 1
        %s160 = smul.addr %s159, 8
        %s161 = scalar_lea.vmem [#allocation2], %s160
        // Predicated region
        $region29: #{tpu_custom_call.1} parent=27 // pred_check
          %p162 = pneg %p43
        $region30: #{tpu_custom_call.1} parent=27 // pred_check_branch
          %164 = sbr.rel (%p162) target = $region32
        $region31: #{tpu_custom_call.1} parent=27 // pred_region
          %165 = dma.done %s158, 128
        $region32: #{tpu_custom_call.1} parent=27 // pred_fallthru
          _
        %s166 = sand.u32 %s56, 1
        %s167 = scalar_lea.sflag [#allocation6], %s166
        %s168 = sand.u32 %s56, 1
        %s169 = smul.addr %s168, 8
        %s170 = scalar_lea.vmem [#allocation5], %s169
        // Predicated region
        $region33: #{tpu_custom_call.1} parent=27 // pred_check
          %p171 = pneg %p69
        $region34: #{tpu_custom_call.1} parent=27 // pred_check_branch
          %173 = sbr.rel (%p171) target = $region36
        $region35: #{tpu_custom_call.1} parent=27 // pred_region
          %174 = dma.done %s167, 128
        $region36: #{tpu_custom_call.1} parent=27 // pred_fallthru
          _
        %s175 = sand.u32 %s30, 1
        %s176 = scalar_lea.sflag [#allocation3], %s175
        %s177 = sand.u32 %s30, 1
        %s178 = smul.addr %s177, 8
        %s179 = scalar_lea.vmem [#allocation2], %s178
        %p180 = pneg %p43
        %p181 = pneg %p40
        %s182 = sand.u32 %s56, 1
        %s183 = scalar_lea.sflag [#allocation6], %s182
        %s184 = sand.u32 %s56, 1
        %s185 = smul.addr %s184, 8
        %s186 = scalar_lea.vmem [#allocation5], %s185
        %p187 = pneg %p69
        %p188 = pneg %p66
        %p189 = pneg %p95
        %p190 = pneg %p92
        %s191 = sand.u32 %s82, 1
        %s192 = scalar_lea.sflag [#allocation4], %s191
        %s193 = sand.u32 %s82, 1
        %s194 = smul.addr %s193, 8
        %s195 = scalar_lea.vmem [#allocation7], %s194
        %v196 = vld [vmem:[%s161] sm:$0xff]
        %v197 = vld [vmem:[%s170] sm:$0xff]
        %v198 = vlaneseq
        %v199 = vshrl.u32 %v198, 7
        %v200 = vsub.s32 0, %v199
        %v201 = vrot.slane %v196, %v200
        %203 = vbcast.lane.b32.xlu0 %v201, 256
        %v204 = vpop.permute.xlu0 %203
        %v205 = vlaneseq
        %v206 = vshrl.u32 %v205, 7
        %v207 = vsub.s32 1, %v206
        %v208 = vrot.slane %v196, %v207
        %210 = vbcast.lane.b32.xlu0 %v208, 256
        %v211 = vpop.permute.xlu0 %210
        %v212 = vlaneseq
        %v213 = vshrl.u32 %v212, 7
        %v214 = vsub.s32 2, %v213
        %v215 = vrot.slane %v196, %v214
        %217 = vbcast.lane.b32.xlu0 %v215, 256
        %v218 = vpop.permute.xlu0 %217
        %v219 = vlaneseq
        %v220 = vshrl.u32 %v219, 7
        %v221 = vsub.s32 3, %v220
        %v222 = vrot.slane %v196, %v221
        %224 = vbcast.lane.b32.xlu0 %v222, 256
        %v225 = vpop.permute.xlu0 %224
        %v226 = vlaneseq
        %v227 = vshrl.u32 %v226, 7
        %v228 = vsub.s32 4, %v227
        %v229 = vrot.slane %v196, %v228
        %231 = vbcast.lane.b32.xlu0 %v229, 256
        %v232 = vpop.permute.xlu0 %231
        %v233 = vlaneseq
        %v234 = vshrl.u32 %v233, 7
        %v235 = vsub.s32 5, %v234
        %v236 = vrot.slane %v196, %v235
        %238 = vbcast.lane.b32.xlu0 %v236, 256
        %v239 = vpop.permute.xlu0 %238
        %v240 = vlaneseq
        %v241 = vshrl.u32 %v240, 7
        %v242 = vsub.s32 6, %v241
        %v243 = vrot.slane %v196, %v242
        %245 = vbcast.lane.b32.xlu0 %v243, 256
        %v246 = vpop.permute.xlu0 %245
        %v247 = vlaneseq
        %v248 = vshrl.u32 %v247, 7
        %v249 = vsub.s32 7, %v248
        %v250 = vrot.slane %v196, %v249
        %252 = vbcast.lane.b32.xlu0 %v250, 256
        %v253 = vpop.permute.xlu0 %252
        %v255 = vcombine.high %v197, %v197
        %v257 = vunpack.c.l.s4 1966171168
        %v258 = vunpack.c.0.s8 %v257
        %v259 = vlaneseq
        %v260 = vshrl.u32 %v259, 7
        %v261 = vsub.s32 %v258, %v260
        %v262 = vrot.slane %v197, %v261
        %v264 = vunpack.c.l.s4 1966171168
        %v265 = vunpack.c.0.s8 %v264
        %v266 = vlaneseq
        %v267 = vshrl.u32 %v266, 7
        %v268 = vsub.s32 %v265, %v267
        %v269 = vrot.slane %v255, %v268
        %v270 = vcombine.high %v262, %v262
        %v271 = vcombine.high %v269, %v269
        %v273 = vunpack.c.l.s4 1966171168
        %v274 = vunpack.c.0.s8 %v273
        %v275 = vlaneseq
        %v276 = vshrl.u32 %v275, 7
        %v277 = vsub.s32 %v274, %v276
        %v278 = vrot.slane %v262, %v277
        %v280 = vunpack.c.l.s4 1966171168
        %v281 = vunpack.c.0.s8 %v280
        %v282 = vlaneseq
        %v283 = vshrl.u32 %v282, 7
        %v284 = vsub.s32 %v281, %v283
        %v285 = vrot.slane %v269, %v284
        %v287 = vunpack.c.l.s4 1966171168
        %v288 = vunpack.c.0.s8 %v287
        %v289 = vlaneseq
        %v290 = vshrl.u32 %v289, 7
        %v291 = vsub.s32 %v288, %v290
        %v292 = vrot.slane %v270, %v291
        %v294 = vunpack.c.l.s4 1966171168
        %v295 = vunpack.c.0.s8 %v294
        %v296 = vlaneseq
        %v297 = vshrl.u32 %v296, 7
        %v298 = vsub.s32 %v295, %v297
        %v299 = vrot.slane %v271, %v298
        %v300 = vcombine.high %v278, %v278
        %v301 = vcombine.high %v285, %v285
        %v302 = vcombine.high %v292, %v292
        %v303 = vcombine.high %v299, %v299
        %v304 = vlaneseq
        %v305 = vshrl.u32 %v304, 7
        %v306 = vsub.s32 0, %v305
        %v307 = vrot.slane %v278, %v306
        %v308 = vlaneseq
        %v309 = vshrl.u32 %v308, 7
        %v310 = vsub.s32 0, %v309
        %v311 = vrot.slane %v292, %v310
        %v312 = vlaneseq
        %v313 = vshrl.u32 %v312, 7
        %v314 = vsub.s32 0, %v313
        %v315 = vrot.slane %v300, %v314
        %v316 = vlaneseq
        %v317 = vshrl.u32 %v316, 7
        %v318 = vsub.s32 0, %v317
        %v319 = vrot.slane %v302, %v318
        %v320 = vlaneseq
        %v321 = vshrl.u32 %v320, 7
        %v322 = vsub.s32 0, %v321
        %v323 = vrot.slane %v285, %v322
        %v324 = vlaneseq
        %v325 = vshrl.u32 %v324, 7
        %v326 = vsub.s32 0, %v325
        %v327 = vrot.slane %v299, %v326
        %v328 = vlaneseq
        %v329 = vshrl.u32 %v328, 7
        %v330 = vsub.s32 0, %v329
        %v331 = vrot.slane %v301, %v330
        %v332 = vlaneseq
        %v333 = vshrl.u32 %v332, 7
        %v334 = vsub.s32 0, %v333
        %v335 = vrot.slane %v303, %v334
        %v344 = vmul.f32 %v204, %v307
        %v345 = vmul.f32 %v211, %v311
        %v346 = vmul.f32 %v218, %v315
        %v347 = vmul.f32 %v225, %v319
        %v348 = vmul.f32 %v232, %v323
        %v349 = vmul.f32 %v239, %v327
        %v350 = vmul.f32 %v246, %v331
        %v351 = vmul.f32 %v253, %v335
        %vm352 = vcmask 64512
        %v353 = vsel %vm352, %v344, 0.0
        %v354 = vsel %vm352, %v345, 0.0
        %v355 = vadd.f32 %v353, %v354
        %v356 = vsel %vm352, %v346, 0.0
        %v357 = vadd.f32 %v355, %v356
        %v358 = vsel %vm352, %v347, 0.0
        %v359 = vadd.f32 %v357, %v358
        %v360 = vsel %vm352, %v348, 0.0
        %v361 = vadd.f32 %v359, %v360
        %v362 = vsel %vm352, %v349, 0.0
        %v363 = vadd.f32 %v361, %v362
        %v364 = vsel %vm352, %v350, 0.0
        %v365 = vadd.f32 %v363, %v364
        %v366 = vsel %vm352, %v351, 0.0
        %v367 = vadd.f32 %v365, %v366
        %v369 = vcombine.high %v367, %v367
        %v371 = vunpack.c.l.s4 1966171168
        %v372 = vunpack.c.0.s8 %v371
        %v373 = vlaneseq
        %v374 = vshrl.u32 %v373, 7
        %v375 = vsub.s32 %v372, %v374
        %v376 = vrot.slane %v367, %v375
        %v378 = vunpack.c.l.s4 1966171168
        %v379 = vunpack.c.0.s8 %v378
        %v380 = vlaneseq
        %v381 = vshrl.u32 %v380, 7
        %v382 = vsub.s32 %v379, %v381
        %v383 = vrot.slane %v369, %v382
        %v384 = vcombine.high %v376, %v376
        %v385 = vcombine.high %v383, %v383
        %v387 = vunpack.c.l.s4 1966171168
        %v388 = vunpack.c.0.s8 %v387
        %v389 = vlaneseq
        %v390 = vshrl.u32 %v389, 7
        %v391 = vsub.s32 %v388, %v390
        %v392 = vrot.slane %v376, %v391
        %v394 = vunpack.c.l.s4 1966171168
        %v395 = vunpack.c.0.s8 %v394
        %v396 = vlaneseq
        %v397 = vshrl.u32 %v396, 7
        %v398 = vsub.s32 %v395, %v397
        %v399 = vrot.slane %v383, %v398
        %v401 = vunpack.c.l.s4 1966171168
        %v402 = vunpack.c.0.s8 %v401
        %v403 = vlaneseq
        %v404 = vshrl.u32 %v403, 7
        %v405 = vsub.s32 %v402, %v404
        %v406 = vrot.slane %v384, %v405
        %v408 = vunpack.c.l.s4 1966171168
        %v409 = vunpack.c.0.s8 %v408
        %v410 = vlaneseq
        %v411 = vshrl.u32 %v410, 7
        %v412 = vsub.s32 %v409, %v411
        %v413 = vrot.slane %v385, %v412
        %v414 = vcombine.high %v392, %v392
        %v415 = vcombine.high %v399, %v399
        %v416 = vcombine.high %v406, %v406
        %v417 = vcombine.high %v413, %v413
        %v418 = vlaneseq
        %v419 = vshrl.u32 %v418, 7
        %v420 = vsub.s32 0, %v419
        %v421 = vrot.slane %v392, %v420
        %v422 = vlaneseq
        %v423 = vshrl.u32 %v422, 7
        %v424 = vsub.s32 0, %v423
        %v425 = vrot.slane %v406, %v424
        %v426 = vlaneseq
        %v427 = vshrl.u32 %v426, 7
        %v428 = vsub.s32 0, %v427
        %v429 = vrot.slane %v414, %v428
        %v430 = vlaneseq
        %v431 = vshrl.u32 %v430, 7
        %v432 = vsub.s32 0, %v431
        %v433 = vrot.slane %v416, %v432
        %v434 = vlaneseq
        %v435 = vshrl.u32 %v434, 7
        %v436 = vsub.s32 0, %v435
        %v437 = vrot.slane %v399, %v436
        %v438 = vlaneseq
        %v439 = vshrl.u32 %v438, 7
        %v440 = vsub.s32 0, %v439
        %v441 = vrot.slane %v413, %v440
        %v442 = vlaneseq
        %v443 = vshrl.u32 %v442, 7
        %v444 = vsub.s32 0, %v443
        %v445 = vrot.slane %v415, %v444
        %v446 = vlaneseq
        %v447 = vshrl.u32 %v446, 7
        %v448 = vsub.s32 0, %v447
        %v449 = vrot.slane %v417, %v448
        %v458 = vmul.f32 %v421, %v197
        %v459 = vmul.f32 %v425, %v197
        %v460 = vmul.f32 %v429, %v197
        %v461 = vmul.f32 %v433, %v197
        %v462 = vmul.f32 %v437, %v197
        %v463 = vmul.f32 %v441, %v197
        %v464 = vmul.f32 %v445, %v197
        %v465 = vmul.f32 %v449, %v197
        %v466 = vsel %vm352, %v458, 0.0
        %467 = vadd.xlane.f32.xlu0 %v466
        %v468 = vpop.xlane.xlu0 %467
        %v469 = vsel %vm352, %v459, 0.0
        %470 = vadd.xlane.f32.xlu0 %v469
        %v471 = vpop.xlane.xlu0 %470
        %v472 = vsel %vm352, %v460, 0.0
        %473 = vadd.xlane.f32.xlu0 %v472
        %v474 = vpop.xlane.xlu0 %473
        %v475 = vsel %vm352, %v461, 0.0
        %476 = vadd.xlane.f32.xlu0 %v475
        %v477 = vpop.xlane.xlu0 %476
        %v478 = vsel %vm352, %v462, 0.0
        %479 = vadd.xlane.f32.xlu0 %v478
        %v480 = vpop.xlane.xlu0 %479
        %v481 = vsel %vm352, %v463, 0.0
        %482 = vadd.xlane.f32.xlu0 %v481
        %v483 = vpop.xlane.xlu0 %482
        %v484 = vsel %vm352, %v464, 0.0
        %485 = vadd.xlane.f32.xlu0 %v484
        %v486 = vpop.xlane.xlu0 %485
        %v487 = vsel %vm352, %v465, 0.0
        %488 = vadd.xlane.f32.xlu0 %v487
        %v489 = vpop.xlane.xlu0 %488
        %v498 = vlaneseq
        %v499 = vand.u32 %v498, 127
        %v500 = vlaneseq
        %v501 = vshrl.u32 %v500, 7
        %v502 = vsub.s32 %v499, %v501
        %v503 = vrot.slane %v468, %v502
        %v504 = vlaneseq
        %v505 = vshrl.u32 %v504, 7
        %v506 = vsub.s32 %v499, %v505
        %v507 = vrot.slane %v471, %v506
        %v508 = vlaneseq
        %v509 = vshrl.u32 %v508, 7
        %v510 = vsub.s32 %v499, %v509
        %v511 = vrot.slane %v474, %v510
        %v512 = vlaneseq
        %v513 = vshrl.u32 %v512, 7
        %v514 = vsub.s32 %v499, %v513
        %v515 = vrot.slane %v477, %v514
        %v516 = vlaneseq
        %v517 = vshrl.u32 %v516, 7
        %v518 = vsub.s32 %v499, %v517
        %v519 = vrot.slane %v480, %v518
        %v520 = vlaneseq
        %v521 = vshrl.u32 %v520, 7
        %v522 = vsub.s32 %v499, %v521
        %v523 = vrot.slane %v483, %v522
        %v524 = vlaneseq
        %v525 = vshrl.u32 %v524, 7
        %v526 = vsub.s32 %v499, %v525
        %v527 = vrot.slane %v486, %v526
        %v528 = vlaneseq
        %v529 = vshrl.u32 %v528, 7
        %v530 = vsub.s32 %v499, %v529
        %v531 = vrot.slane %v489, %v530
        %vm532 = vcmask 1041409
        %v533 = vsel %vm532, %v507, %v503
        %vm534 = vcmask 1042434
        %v535 = vsel %vm534, %v511, %v533
        %vm536 = vcmask 1043459
        %v537 = vsel %vm536, %v515, %v535
        %vm538 = vcmask 1044484
        %v539 = vsel %vm538, %v519, %v537
        %vm540 = vcmask 1045509
        %v541 = vsel %vm540, %v523, %v539
        %vm542 = vcmask 1046534
        %v543 = vsel %vm542, %v527, %v541
        %vm544 = vcmask 1047559
        %v545 = vsel %vm544, %v531, %v543
        %547 = vst.msk [vmem:[%s195] sm:$0xff] %vm352, %v545
        %s548 = sand.u32 %s82, 1
        %s549 = scalar_lea.sflag [#allocation4], %s548
        %s550 = sand.u32 %s82, 1
        %s551 = smul.addr %s550, 8
        %s552 = scalar_lea.vmem [#allocation7], %s551
        // Predicated region
        $region37: #{tpu_custom_call.1} parent=27 // pred_check
          %p553 = pneg %p92
        $region38: #{tpu_custom_call.1} parent=27 // pred_check_branch
          %555 = sbr.rel (%p553) target = $region40
        $region39: #{tpu_custom_call.1} parent=27 // pred_region
          %s557 = ssub.s32 128, 128
          %558 = vsyncadd %s549, %s557
          %s559 = smul.addr %s22, 128
          %s560 = scalar_lea.hbm %s2, %s559
          %s562 = sshll.u32 %s552, 4
          %s563 = int_to_ptr.vmem [resolvable:$true] %s562
          %565 = dma.vmem_to_hbm [thread:$0]  %s563, 128, %s560, %s549
        $region40: #{tpu_custom_call.1} parent=27 // pred_fallthru
          _
      $region28: #{tpu_custom_call.1} parent=5 // pred_fallthru
        _
      %p566 = scmp.le.s32.totalorder 2, %s17
      // Predicated region
      $region41: #{tpu_custom_call.1} parent=5 // pred_check
        %p567 = pneg %p566
      $region42: #{tpu_custom_call.1} parent=5 // pred_check_branch
        %569 = sbr.rel (%p567) target = $region44
      $region43: #{tpu_custom_call.1} parent=5 // pred_region
        %s570 = ssub.s32 %s17, 2
        // Predicated region
        $region45: #{tpu_custom_call.1} parent=43 // pred_check
          %p571 = pneg %p98
        $region46: #{tpu_custom_call.1} parent=43 // pred_check_branch
          %573 = sbr.rel (%p571) target = $region48
        $region47: #{tpu_custom_call.1} parent=43 // pred_region
          %s574 = sand.u32 %s83, 1
          %s575 = scalar_lea.sflag [#allocation4], %s574
          %s576 = sand.u32 %s83, 1
          %s577 = smul.addr %s576, 8
          %s578 = scalar_lea.vmem [#allocation7], %s577
          %579 = dma.done %s575, 128
        $region48: #{tpu_custom_call.1} parent=43 // pred_fallthru
          _
      $region44: #{tpu_custom_call.1} parent=5 // pred_fallthru
        _
    $region6: #{tpu_custom_call.1} parent=1 // loop_footer
      %s21 = sadd.s32 1, %s17
    $region7: #{tpu_custom_call.1} parent=1 // loop_footer_branch
      %16 = sbr.rel target = $region3
    $region8: #{tpu_custom_call.1} parent=1 // loop_exit
      _
    %580 = vsyncpa [#allocation3], 1
    %s581 = scalar_lea.sflag [#allocation3], 1
    %582 = vsyncpa %s581, 1
    %583 = vsyncpa [#allocation6], 1
    %s584 = scalar_lea.sflag [#allocation6], 1
    %585 = vsyncpa %s584, 1
    %586 = vsyncpa [#allocation4], 1
    %s587 = scalar_lea.sflag [#allocation4], 1
    %588 = vsyncpa %s587, 1

</llo_original>
